<compile_context>
chip_gen: v7x
topology: tpu7x:2x2x1
jax: 0.10.0
libtpu: 0.0.40
codegen_flags: <defaults>
</compile_context>

<pallas_src>
import math

import numpy as np
import jax
import jax.numpy as jnp
from jax.experimental import pallas as pl
from jax.experimental.pallas import tpu as pltpu


# ----------------------------------------------------------------------------
# Host-side tap / band-matrix construction (same math as the torch __init__).
# ----------------------------------------------------------------------------
def _make_gaussian_taps(sigma, window=0):
    if not window:
        window = max(math.ceil((sigma * 6 + 1) / 2) * 2 - 1, 3)
    if sigma:
        idx = np.arange(window, dtype=np.float64)
        kern = np.exp(-((idx - window // 2) ** 2) / 2.0 / (sigma ** 2))
        kern = kern / kern.sum()
    else:
        kern = np.ones([1], dtype=np.float64)
    return kern


def _reflect_index(j, size):
    # Single reflection suffices because pad < size is enforced for reflect.
    if j < 0:
        return -j
    if j >= size:
        return 2 * (size - 1) - j
    return j


def _band_matrix(taps, size, sp, ep, mode, value):
    """Fold the 1D conv + boundary mode into a (size,size) matrix (+ bias).

    out[i] = sum_j A[i,j] * x[j] + bias[i]   (bias nonzero only for 'constant')
    """
    K = len(taps)
    A = np.zeros((size, size), dtype=np.float64)
    oob = np.zeros((size,), dtype=np.float64)
    for i in range(size):
        for k in range(K):
            j = i + k - sp
            if 0 <= j < size:
                A[i, j] += taps[k]
            elif mode == 'reflect':
                A[i, _reflect_index(j, size)] += taps[k]
            elif mode == 'replicate':
                A[i, min(max(j, 0), size - 1)] += taps[k]
            elif mode == 'circular':
                A[i, j % size] += taps[k]
            elif mode == 'constant':
                oob[i] += taps[k]
            else:
                raise ValueError(f"unsupported padding mode: {mode!r}")
    return A, oob * float(value)


# ----------------------------------------------------------------------------
# Kernels.
# ----------------------------------------------------------------------------
def _kron_kernel(x_ref, bt_ref, bias_ref, o_ref):
    """Small-plane path: one fused matmul per plane batch.

    x_ref:    (TB, HW) native dtype   (HW = H*W, lane-dense for HW >= 128)
    bt_ref:   (HW, HW) f32  = kron(A_h, A_w)^T  (boundary folded in)
    bias_ref: (1, HW)  f32  (nonzero only for constant mode)
    """
    x = x_ref[...].astype(jnp.float32)
    # MXU matmul; f32 operands keep f32-level accuracy (multi-pass emulation).
    y = jnp.dot(x, bt_ref[...], preferred_element_type=jnp.float32)
    y = y + bias_ref[...]
    o_ref[...] = y.astype(o_ref.dtype)


def _band_kernel(x_ref, awt_ref, ah_ref, bias_w_ref, bias_h_ref, o_ref):
    """Large-plane path: per-plane  A_h @ (X @ A_w^T)  as two 2D MXU matmuls."""
    x = x_ref[0].astype(jnp.float32)                      # (H, W)
    # Horizontal pass (along W), boundary already folded into A_w.
    y = jnp.dot(x, awt_ref[...], preferred_element_type=jnp.float32)
    y = y + bias_w_ref[...]                               # (1, W)
    # Vertical pass (along H).
    z = jnp.dot(ah_ref[...], y, preferred_element_type=jnp.float32)
    z = z + bias_h_ref[...]                               # (H, 1)
    o_ref[0] = z.astype(o_ref.dtype)


# ----------------------------------------------------------------------------
# Generation-aware sizing helpers.
# ----------------------------------------------------------------------------
_KRON_MAX_PLANE = 1024  # H*W above this -> per-plane band path.


def _vmem_limit_and_budget(const_bytes):
    """Scoped-VMEM limit and a streaming-block budget, per chip generation."""
    phys = 64 * 1024 * 1024  # conservative default (v7x per-TC VMEM)
    try:
        info = pltpu.get_tpu_info()
        phys = int(getattr(info, 'vmem_capacity_bytes', phys) or phys)
    except Exception:
        pass
    # Leave headroom below physical (v7x: 64 MiB -> 48 MiB; v5e/v6e: 100 MiB).
    limit = min(max(phys - 16 * 1024 * 1024, 32 * 1024 * 1024),
                100 * 1024 * 1024)
    # Budget for the per-step streaming blocks, leaving room for the resident
    # (double-buffered) band/Kronecker matrices and compiler scratch.
    budget = limit // 3 - 2 * const_bytes
    return limit, max(budget, 2 * 1024 * 1024)


def _choose_tb(nc, per_plane_bytes, budget):
    """Plane-batch size: multiple of 8 (sublane aligned), VMEM-budgeted, and
    capped so large-NC problems keep a multi-step grid (megacore + pipeline)."""
    if nc <= 8:
        return nc                      # tiny problem: one full-extent block
    tb_fit = max(8, (budget // max(per_plane_bytes, 1)) // 8 * 8)
    tb_steps = max(8, (pl.cdiv(nc, 4) // 8) * 8)   # aim for >= ~4 grid steps
    tb_cap = max(8, (nc // 8) * 8)
    return min(tb_fit, tb_steps, tb_cap)


# ----------------------------------------------------------------------------
# Public wrapper (forward of the torch module).
# ----------------------------------------------------------------------------
def gaussian_blur2d(x, sigma, window=0, mode='reflect', value=0.0):
    taps = _make_gaussian_taps(sigma, window)
    K = int(taps.shape[0])
    sp, ep = (K - 1) // 2, K // 2

    n, c, h, w = x.shape
    if mode == 'reflect' and (max(sp, ep) >= h or max(sp, ep) >= w):
        raise ValueError("reflect padding must be smaller than the spatial "
                         "dims (same restriction as torch)")
    if mode == 'circular' and (max(sp, ep) > h or max(sp, ep) > w):
        raise ValueError("circular padding must not exceed the spatial dims")

    nc = n * c
    a_h, oob_h = _band_matrix(taps, h, sp, ep, mode, value)   # (H,H), (H,)
    a_w, oob_w = _band_matrix(taps, w, sp, ep, mode, value)   # (W,W), (W,)
    itemsize = jnp.dtype(x.dtype).itemsize

    if h * w <= _KRON_MAX_PLANE:
        # ---- Fused Kronecker path (lane-dense, one matmul per block) -------
        hw = h * w
        # out_flat = x_flat @ kron(A_h, A_w)^T + bias
        bt = np.kron(a_h, a_w).T.astype(np.float32)                  # (HW,HW)
        bias = (a_h.sum(axis=1)[:, None] * oob_w[None, :]
                + oob_h[:, None]).reshape(1, hw).astype(np.float32)  # (1,HW)

        const_bytes = bt.nbytes + bias.nbytes
        limit, budget = _vmem_limit_and_budget(const_bytes)
        # Per-plane pipeline footprint: double-buffered native in & out rows
        # plus the f32 compute copies of x and y.
        per_plane = hw * (4 * itemsize + 8)
        tb = _choose_tb(nc, per_plane, budget)

        xr = x.reshape(nc, hw)   # layout-preserving -> free reshape
        out = pl.pallas_call(
            _kron_kernel,
            out_shape=jax.ShapeDtypeStruct((nc, hw), x.dtype),
            grid=(pl.cdiv(nc, tb),),
            in_specs=[pl.BlockSpec((tb, hw), lambda i: (i, 0)),
                      pl.BlockSpec((hw, hw), lambda i: (0, 0)),
                      pl.BlockSpec((1, hw), lambda i: (0, 0))],
            out_specs=pl.BlockSpec((tb, hw), lambda i: (i, 0)),
            compiler_params=pltpu.CompilerParams(
                dimension_semantics=("parallel",),
                vmem_limit_bytes=limit),
        )(xr, jnp.asarray(bt), jnp.asarray(bias))
        return out.reshape(n, c, h, w)

    # ---- Band-matrix path for larger planes -------------------------------
    # TODO(synk): H-strip tile the plane (accumulating the vertical pass) for
    # planes whose full (H, W) block does not fit VMEM.
    awt = a_w.T.astype(np.float32)                     # (W, W): X @ A_w^T
    ah = a_h.astype(np.float32)                        # (H, H)
    bias_w = oob_w.reshape(1, w).astype(np.float32)
    bias_h = oob_h.reshape(h, 1).astype(np.float32)
    const_bytes = awt.nbytes + ah.nbytes + bias_w.nbytes + bias_h.nbytes
    limit, _ = _vmem_limit_and_budget(const_bytes)

    xr = x.reshape(nc, h, w)
    out = pl.pallas_call(
        _band_kernel,
        out_shape=jax.ShapeDtypeStruct((nc, h, w), x.dtype),
        grid=(nc,),
        in_specs=[pl.BlockSpec((1, h, w), lambda i: (i, 0, 0)),
                  pl.BlockSpec((w, w), lambda i: (0, 0)),
                  pl.BlockSpec((h, h), lambda i: (0, 0)),
                  pl.BlockSpec((1, w), lambda i: (0, 0)),
                  pl.BlockSpec((h, 1), lambda i: (0, 0))],
        out_specs=pl.BlockSpec((1, h, w), lambda i: (i, 0, 0)),
        compiler_params=pltpu.CompilerParams(
            dimension_semantics=("parallel",),
            vmem_limit_bytes=limit),
    )(xr, jnp.asarray(awt), jnp.asarray(ah),
      jnp.asarray(bias_w), jnp.asarray(bias_h))
    return out.reshape(n, c, h, w)


# ----------------------------------------------------------------------------
# Pure-JAX reference mirroring the torch forward.
# ----------------------------------------------------------------------------
def _reference_blur(x, sigma, window=0, mode='reflect', value=0.0):
    taps = np.asarray(_make_gaussian_taps(sigma, window), dtype=np.float32)
    K = taps.shape[0]
    sp, ep = (K - 1) // 2, K // 2
    n, c, h, w = x.shape
    xr = jnp.asarray(x).reshape(n * c, h, w).astype(jnp.float32)
    pad = ((0, 0), (sp, ep), (sp, ep))
    if mode == 'constant':
        xp = jnp.pad(xr, pad, mode='constant', constant_values=float(value))
    elif mode == 'replicate':
        xp = jnp.pad(xr, pad, mode='edge')
    elif mode == 'circular':
        xp = jnp.pad(xr, pad, mode='wrap')
    else:
        xp = jnp.pad(xr, pad, mode='reflect')
    acc_h = sum(taps[k] * xp[:, :, k:k + w] for k in range(K))
    acc_v = sum(taps[k] * acc_h[:, k:k + h, :] for k in range(K))
    return acc_v.reshape(n, c, h, w).astype(x.dtype)


if __name__ == "__main__":
    key = jax.random.PRNGKey(0)
    k1, k2, k3 = jax.random.split(key, 3)

    # Tolerances: the Pallas path runs the conv on the MXU (f32 operands,
    # multi-pass emulation) while the reference is a VPU-style f32 tap sum;
    # typical deviation is ~1e-6, 1e-4 leaves comfortable margin.
    RTOL = ATOL = 1e-4

    # 1) Main case: reflect (default), sigma=1 -> window 7, pads (3, 3).
    x = jax.random.normal(k1, (2, 4, 16, 16), dtype=jnp.float32)
    y = jax.block_until_ready(gaussian_blur2d(x, 1.0))
    assert y.shape == x.shape and y.dtype == x.dtype
    np.testing.assert_allclose(np.asarray(y),
                               np.asarray(_reference_blur(x, 1.0)),
                               rtol=RTOL, atol=ATOL)

    # 2) sigma == 0 -> single tap of 1.0, no padding: identity blur.
    y0 = jax.block_until_ready(gaussian_blur2d(x, 0.0))
    np.testing.assert_allclose(np.asarray(y0), np.asarray(x),
                               rtol=RTOL, atol=ATOL)

    # 3) nc not divisible by the plane batch (nc=15, tb=8): partial tail block.
    x3 = jax.random.normal(k2, (3, 5, 16, 16), dtype=jnp.float32)
    y3 = jax.block_until_ready(gaussian_blur2d(x3, 1.0))
    np.testing.assert_allclose(np.asarray(y3),
                               np.asarray(_reference_blur(x3, 1.0)),
                               rtol=RTOL, atol=ATOL)

    # 4) Larger plane (H*W > 1024) -> per-plane band-matrix path.
    x4 = jax.random.normal(k3, (1, 2, 40, 40), dtype=jnp.float32)
    y4 = jax.block_until_ready(gaussian_blur2d(x4, 2.0))
    np.testing.assert_allclose(np.asarray(y4),
                               np.asarray(_reference_blur(x4, 2.0)),
                               rtol=RTOL, atol=ATOL)

    # 5) Constant padding with non-zero value (additive-bias path).
    y5 = jax.block_until_ready(
        gaussian_blur2d(x, 1.0, mode='constant', value=0.5))
    np.testing.assert_allclose(
        np.asarray(y5),
        np.asarray(_reference_blur(x, 1.0, mode='constant', value=0.5)),
        rtol=RTOL, atol=ATOL)

    print("KERNEL_OK")
</pallas_src>

<mosaic_0001>
module attributes {stable_mosaic.version = 11 : i64} {
  func.func @_kron_kernel(%arg0: i32, %arg1: memref<8x256xf32, #tpu.memory_space<vmem>>, %arg2: memref<256x256xf32, #tpu.memory_space<vmem>>, %arg3: memref<1x256xf32, #tpu.memory_space<vmem>>, %arg4: memref<8x256xf32, #tpu.memory_space<vmem>>) attributes {dimension_semantics = [#tpu.dimension_semantics<parallel>], iteration_bounds = array<i64: 1>, scalar_prefetch = 0 : i64, scratch_operands = 0 : i64, tpu.core_type = #tpu.core_type<tc>, window_params = [{transform_indices = @transform_0, window_bounds = array<i64: 8, 256>}, {pipeline_mode = #tpu.pipeline_mode<synchronous>, transform_indices = @transform_1, window_bounds = array<i64: 256, 256>}, {pipeline_mode = #tpu.pipeline_mode<synchronous>, transform_indices = @transform_2, window_bounds = array<i64: 1, 256>}, {transform_indices = @transform_3, window_bounds = array<i64: 8, 256>}]} {
    %c0 = arith.constant 0 : index
    %c0_0 = arith.constant 0 : index
    %0 = vector.load %arg1[%c0, %c0_0] : memref<8x256xf32, #tpu.memory_space<vmem>>, vector<8x256xf32>
    %c0_1 = arith.constant 0 : index
    %c0_2 = arith.constant 0 : index
    %1 = vector.load %arg2[%c0_1, %c0_2] : memref<256x256xf32, #tpu.memory_space<vmem>>, vector<256x256xf32>
    %cst = arith.constant dense<0.000000e+00> : vector<8x256xf32>
    %2 = tpu.matmul %0, %1, %cst {dimension_numbers = #tpu.dot_dimension_numbers<[1], [0], [0], [1], [0, 0, 1, 1], [], []>} : vector<8x256xf32>, vector<256x256xf32>, vector<8x256xf32> -> vector<8x256xf32>
    %c0_3 = arith.constant 0 : index
    %c0_4 = arith.constant 0 : index
    %3 = vector.load %arg3[%c0_3, %c0_4] : memref<1x256xf32, #tpu.memory_space<vmem>>, vector<1x256xf32>
    %4 = vector.broadcast %3 : vector<1x256xf32> to vector<8x256xf32>
    %5 = arith.addf %2, %4 : vector<8x256xf32>
    %c0_5 = arith.constant 0 : index
    %c0_6 = arith.constant 0 : index
    %6 = vector.load %arg4[%c0_5, %c0_6] : memref<8x256xf32, #tpu.memory_space<vmem>>, vector<8x256xf32>
    tpu.vector_store %arg4[%c0_5, %c0_6], %5 {strides = array<i32>} : memref<8x256xf32, #tpu.memory_space<vmem>>, vector<8x256xf32>,
    return
  }
  func.func @transform_0(%arg0: i32) -> (i32, i32) {
    %c0_i32 = arith.constant 0 : i32
    %c0_i32_0 = arith.constant 0 : i32
    return %arg0, %c0_i32 : i32, i32
  }
  func.func @transform_1(%arg0: i32) -> (i32, i32) {
    %c0_i32 = arith.constant 0 : i32
    %c0_i32_0 = arith.constant 0 : i32
    %c0_i32_1 = arith.constant 0 : i32
    return %c0_i32, %c0_i32_0 : i32, i32
  }
  func.func @transform_2(%arg0: i32) -> (i32, i32) {
    %c0_i32 = arith.constant 0 : i32
    %c0_i32_0 = arith.constant 0 : i32
    %c0_i32_1 = arith.constant 0 : i32
    return %c0_i32, %c0_i32_0 : i32, i32
  }
  func.func @transform_3(%arg0: i32) -> (i32, i32) {
    %c0_i32 = arith.constant 0 : i32
    %c0_i32_0 = arith.constant 0 : i32
    return %arg0, %c0_i32 : i32, i32
  }
}

</mosaic_0001>

<llo_original>
// kernel: tpu_custom_call.1
$region0: #{tpu_custom_call.1}
  #allocation0 [shape = 'u32[]', space=smem, size = 0x4, offset = 0x4, fixed_abs, tag = 'smem constant byte address 0x4 - core index']
  #allocation1 [shape = 'u32[144,128]{1,0:T(1,128)}', space=vmem, size = 0x12000, scoped, tag = 'internal scratch']
  %s0 = inlined_call_operand.hbm [shape: f32[8,256], index: 0, kind: input, shape index: {}]
  %s1 = inlined_call_operand.hbm [shape: f32[256,256], index: 1, kind: input, shape index: {}]
  %s2 = inlined_call_operand.vmem [shape: f32[1,256], index: 2, kind: input, shape index: {}]
  %s3 = inlined_call_operand.hbm [shape: f32[8,256], index: 3, kind: output, shape index: {}]
  %s4 = sld [smem:[#allocation0]]
  $region30: #{tpu_custom_call.1} parent=0
    _
  %s6 = ssub.s32 1, %s4
  %s7 = scalar_select 0, %s6, %s4
  $region1: #{tpu_custom_call.1} parent=0
    #allocation2 [shape = 'u8[8192]{0}', space=vmem, size = 0x2000, scoped, tag = 'input window, operand 0, single buffered']
    #allocation3 [shape = 's32[1]{0}', space=sflag, size = 0x4, scoped, tag = 'scoped memory for tpu_custom_call.1']
    #allocation4 [shape = 's32[1]{0}', space=sflag, size = 0x4, scoped, tag = 'scoped memory for tpu_custom_call.1']
    #allocation5 [shape = 'u8[262144]{0}', space=vmem, size = 0x40000, scoped, tag = 'input window, operand 1, single buffered']
    #allocation6 [shape = 's32[1]{0}', space=sflag, size = 0x4, scoped, tag = 'scoped memory for tpu_custom_call.1']
    #allocation7 [shape = 'u8[8192]{0}', space=vmem, size = 0x2000, scoped, tag = 'output window, operand 0, single buffered']
    %8 = vsyncpa [#allocation3], 0
    %9 = vsyncpa [#allocation6], 0
    %10 = vsyncpa [#allocation4], 0
    // Predicated region
    $region2: #{tpu_custom_call.1} parent=1 // pred_check
      _
    $region3: #{tpu_custom_call.1} parent=1 // pred_check_branch
      %12 = sbr.rel (0) target = $region5
    $region4: #{tpu_custom_call.1} parent=1 // pred_region
      %s14 = ssub.s32 256, 256
      %15 = vsyncadd [#allocation3], %s14
      %s17 = sshll.u32 [#allocation2], 4
      %s18 = int_to_ptr.vmem [resolvable:$true] %s17
      %20 = dma.hbm_to_vmem [thread:$0]  %s0, 256, %s18, [#allocation3]
    $region5: #{tpu_custom_call.1} parent=1 // pred_fallthru
      _
    // Predicated region
    $region6: #{tpu_custom_call.1} parent=1 // pred_check
      _
    $region7: #{tpu_custom_call.1} parent=1 // pred_check_branch
      %22 = sbr.rel (0) target = $region9
    $region8: #{tpu_custom_call.1} parent=1 // pred_region
      %s24 = ssub.s32 8192, 8192
      %25 = vsyncadd [#allocation6], %s24
      %s26 = sshll.u32 [#allocation5], 4
      %s27 = int_to_ptr.vmem [resolvable:$true] %s26
      %32 = dma.hbm_to_vmem [thread:$0]  %s1, 8192, %s27, [#allocation6], 256, 256, 16
    $region9: #{tpu_custom_call.1} parent=1 // pred_fallthru
      _
    // Predicated region
    $region10: #{tpu_custom_call.1} parent=1 // pred_check
      _
    $region11: #{tpu_custom_call.1} parent=1 // pred_check_branch
      %34 = sbr.rel (0) target = $region13
    $region12: #{tpu_custom_call.1} parent=1 // pred_region
      _
    $region13: #{tpu_custom_call.1} parent=1 // pred_fallthru
      _
    // Predicated region
    $region14: #{tpu_custom_call.1} parent=1 // pred_check
      _
    $region15: #{tpu_custom_call.1} parent=1 // pred_check_branch
      %36 = sbr.rel (0) target = $region17
    $region16: #{tpu_custom_call.1} parent=1 // pred_region
      %37 = dma.done [#allocation3], 256
    $region17: #{tpu_custom_call.1} parent=1 // pred_fallthru
      _
    // Predicated region
    $region18: #{tpu_custom_call.1} parent=1 // pred_check
      _
    $region19: #{tpu_custom_call.1} parent=1 // pred_check_branch
      %39 = sbr.rel (0) target = $region21
    $region20: #{tpu_custom_call.1} parent=1 // pred_region
      %40 = dma.done [#allocation6], 8192
    $region21: #{tpu_custom_call.1} parent=1 // pred_fallthru
      _
    %v41 = vld [vmem:[#allocation2] sm:$0xff]
    %v42 = vld [vmem:[#allocation2 + $0x8] sm:$0xff]
    %v43 = vld [vmem:[#allocation5] sm:$0xff]
    %v44 = vld [vmem:[#allocation5 + $0x8] sm:$0xff]
    %v45 = vld [vmem:[#allocation5 + $0x10] sm:$0xff]
    %v46 = vld [vmem:[#allocation5 + $0x18] sm:$0xff]
    %v47 = vld [vmem:[#allocation5 + $0x20] sm:$0xff]
    %v48 = vld [vmem:[#allocation5 + $0x28] sm:$0xff]
    %v49 = vld [vmem:[#allocation5 + $0x30] sm:$0xff]
    %v50 = vld [vmem:[#allocation5 + $0x38] sm:$0xff]
    %v51 = vld [vmem:[#allocation5 + $0x40] sm:$0xff]
    %v52 = vld [vmem:[#allocation5 + $0x48] sm:$0xff]
    %v53 = vld [vmem:[#allocation5 + $0x50] sm:$0xff]
    %v54 = vld [vmem:[#allocation5 + $0x58] sm:$0xff]
    %v55 = vld [vmem:[#allocation5 + $0x60] sm:$0xff]
    %v56 = vld [vmem:[#allocation5 + $0x68] sm:$0xff]
    %v57 = vld [vmem:[#allocation5 + $0x70] sm:$0xff]
    %v58 = vld [vmem:[#allocation5 + $0x78] sm:$0xff]
    %v59 = vld [vmem:[#allocation5 + $0x80] sm:$0xff]
    %v60 = vld [vmem:[#allocation5 + $0x88] sm:$0xff]
    %v61 = vld [vmem:[#allocation5 + $0x90] sm:$0xff]
    %v62 = vld [vmem:[#allocation5 + $0x98] sm:$0xff]
    %v63 = vld [vmem:[#allocation5 + $0xa0] sm:$0xff]
    %v64 = vld [vmem:[#allocation5 + $0xa8] sm:$0xff]
    %v65 = vld [vmem:[#allocation5 + $0xb0] sm:$0xff]
    %v66 = vld [vmem:[#allocation5 + $0xb8] sm:$0xff]
    %v67 = vld [vmem:[#allocation5 + $0xc0] sm:$0xff]
    %v68 = vld [vmem:[#allocation5 + $0xc8] sm:$0xff]
    %v69 = vld [vmem:[#allocation5 + $0xd0] sm:$0xff]
    %v70 = vld [vmem:[#allocation5 + $0xd8] sm:$0xff]
    %v71 = vld [vmem:[#allocation5 + $0xe0] sm:$0xff]
    %v72 = vld [vmem:[#allocation5 + $0xe8] sm:$0xff]
    %v73 = vld [vmem:[#allocation5 + $0xf0] sm:$0xff]
    %v74 = vld [vmem:[#allocation5 + $0xf8] sm:$0xff]
    %v75 = vld [vmem:[#allocation5 + $0x100] sm:$0xff]
    %v76 = vld [vmem:[#allocation5 + $0x108] sm:$0xff]
    %v77 = vld [vmem:[#allocation5 + $0x110] sm:$0xff]
    %v78 = vld [vmem:[#allocation5 + $0x118] sm:$0xff]
    %v79 = vld [vmem:[#allocation5 + $0x120] sm:$0xff]
    %v80 = vld [vmem:[#allocation5 + $0x128] sm:$0xff]
    %v81 = vld [vmem:[#allocation5 + $0x130] sm:$0xff]
    %v82 = vld [vmem:[#allocation5 + $0x138] sm:$0xff]
    %v83 = vld [vmem:[#allocation5 + $0x140] sm:$0xff]
    %v84 = vld [vmem:[#allocation5 + $0x148] sm:$0xff]
    %v85 = vld [vmem:[#allocation5 + $0x150] sm:$0xff]
    %v86 = vld [vmem:[#allocation5 + $0x158] sm:$0xff]
    %v87 = vld [vmem:[#allocation5 + $0x160] sm:$0xff]
    %v88 = vld [vmem:[#allocation5 + $0x168] sm:$0xff]
    %v89 = vld [vmem:[#allocation5 + $0x170] sm:$0xff]
    %v90 = vld [vmem:[#allocation5 + $0x178] sm:$0xff]
    %v91 = vld [vmem:[#allocation5 + $0x180] sm:$0xff]
    %v92 = vld [vmem:[#allocation5 + $0x188] sm:$0xff]
    %v93 = vld [vmem:[#allocation5 + $0x190] sm:$0xff]
    %v94 = vld [vmem:[#allocation5 + $0x198] sm:$0xff]
    %v95 = vld [vmem:[#allocation5 + $0x1a0] sm:$0xff]
    %v96 = vld [vmem:[#allocation5 + $0x1a8] sm:$0xff]
    %v97 = vld [vmem:[#allocation5 + $0x1b0] sm:$0xff]
    %v98 = vld [vmem:[#allocation5 + $0x1b8] sm:$0xff]
    %v99 = vld [vmem:[#allocation5 + $0x1c0] sm:$0xff]
    %v100 = vld [vmem:[#allocation5 + $0x1c8] sm:$0xff]
    %v101 = vld [vmem:[#allocation5 + $0x1d0] sm:$0xff]
    %v102 = vld [vmem:[#allocation5 + $0x1d8] sm:$0xff]
    %v103 = vld [vmem:[#allocation5 + $0x1e0] sm:$0xff]
    %v104 = vld [vmem:[#allocation5 + $0x1e8] sm:$0xff]
    %v105 = vld [vmem:[#allocation5 + $0x1f0] sm:$0xff]
    %v106 = vld [vmem:[#allocation5 + $0x1f8] sm:$0xff]
    %v107 = vld [vmem:[%s2] sm:$0x3]
    %v109 = vlaneseq
    %v110 = vshrl.u32 %v109, 7
    %v111 = vsub.s32 0, %v110
    %v112 = vrot.slane %v107, %v111
    %v113 = vlaneseq
    %v114 = vshrl.u32 %v113, 7
    %v115 = vsub.s32 1, %v114
    %v116 = vrot.slane %v107, %v115
    %119 = vmatprep.subr.mxu0 %v44
    %120 = vmatpush1.msra.mxu0 %v43
    %121 = vmatprep.subr.mxu0 %v46
    %122 = vmatpush1.msra.mxu0 %v45
    %123 = vmatprep.subr.mxu0 %v48
    %124 = vmatpush1.msra.mxu0 %v47
    %125 = vmatprep.subr.mxu0 %v50
    %126 = vmatpush1.msra.mxu0 %v49
    %127 = vmatprep.subr.mxu0 %v52
    %128 = vmatpush1.msra.mxu0 %v51
    %129 = vmatprep.subr.mxu0 %v54
    %130 = vmatpush1.msra.mxu0 %v53
    %131 = vmatprep.subr.mxu0 %v56
    %132 = vmatpush1.msra.mxu0 %v55
    %133 = vmatprep.subr.mxu0 %v58
    %134 = vmatpush1.msra.mxu0 %v57
    %135 = vmatprep.subr.mxu0 %v60
    %136 = vmatpush1.msra.mxu0 %v59
    %137 = vmatprep.subr.mxu0 %v62
    %138 = vmatpush1.msra.mxu0 %v61
    %139 = vmatprep.subr.mxu0 %v64
    %140 = vmatpush1.msra.mxu0 %v63
    %141 = vmatprep.subr.mxu0 %v66
    %142 = vmatpush1.msra.mxu0 %v65
    %143 = vmatprep.subr.mxu0 %v68
    %144 = vmatpush1.msra.mxu0 %v67
    %145 = vmatprep.subr.mxu0 %v70
    %146 = vmatpush1.msra.mxu0 %v69
    %147 = vmatprep.subr.mxu0 %v72
    %148 = vmatpush1.msra.mxu0 %v71
    %149 = vmatprep.subr.mxu0 %v74
    %150 = vmatpush1.msra.mxu0 %v73
    %151 = vmatprep.subr.mxu0 %v76
    %152 = vmatpush1.msra.mxu0 %v75
    %153 = vmatprep.subr.mxu0 %v78
    %154 = vmatpush1.msra.mxu0 %v77
    %155 = vmatprep.subr.mxu0 %v80
    %156 = vmatpush1.msra.mxu0 %v79
    %157 = vmatprep.subr.mxu0 %v82
    %158 = vmatpush1.msra.mxu0 %v81
    %159 = vmatprep.subr.mxu0 %v84
    %160 = vmatpush1.msra.mxu0 %v83
    %161 = vmatprep.subr.mxu0 %v86
    %162 = vmatpush1.msra.mxu0 %v85
    %163 = vmatprep.subr.mxu0 %v88
    %164 = vmatpush1.msra.mxu0 %v87
    %165 = vmatprep.subr.mxu0 %v90
    %166 = vmatpush1.msra.mxu0 %v89
    %167 = vmatprep.subr.mxu0 %v92
    %168 = vmatpush1.msra.mxu0 %v91
    %169 = vmatprep.subr.mxu0 %v94
    %170 = vmatpush1.msra.mxu0 %v93
    %171 = vmatprep.subr.mxu0 %v96
    %172 = vmatpush1.msra.mxu0 %v95
    %173 = vmatprep.subr.mxu0 %v98
    %174 = vmatpush1.msra.mxu0 %v97
    %175 = vmatprep.subr.mxu0 %v100
    %176 = vmatpush1.msra.mxu0 %v99
    %177 = vmatprep.subr.mxu0 %v102
    %178 = vmatpush1.msra.mxu0 %v101
    %179 = vmatprep.subr.mxu0 %v104
    %180 = vmatpush1.msra.mxu0 %v103
    %181 = vmatprep.subr.mxu0 %v106
    %182 = vmatpush1.msra.mxu0 %v105
    %183 = vmatprep.mubr.f32.mxu0 %v42
    %184 = vmatmul.mubr.f32.gmra.mrb[0].mxu0 %v41
    %v185 = vpop.f32.mrb[0].mxu0
    %v186 = vadd.f32 %v112, %v185
    %v187 = vpop.f32.mrb[0].mxu0
    %v188 = vadd.f32 %v116, %v187
    %189 = vdwg.mxu0
    %190 = vst [vmem:[#allocation7] sm:$0xff] %v186
    %191 = vst [vmem:[#allocation7 + $0x8] sm:$0xff] %v188
    // Predicated region
    $region22: #{tpu_custom_call.1} parent=1 // pred_check
      _
    $region23: #{tpu_custom_call.1} parent=1 // pred_check_branch
      %193 = sbr.rel (0) target = $region25
    $region24: #{tpu_custom_call.1} parent=1 // pred_region
      %s195 = ssub.s32 256, 256
      %196 = vsyncadd [#allocation4], %s195
      %s198 = sshll.u32 [#allocation7], 4
      %s199 = int_to_ptr.vmem [resolvable:$true] %s198
      %201 = dma.vmem_to_hbm [thread:$0]  %s199, 256, %s3, [#allocation4]
    $region25: #{tpu_custom_call.1} parent=1 // pred_fallthru
      _
    // Predicated region
    $region26: #{tpu_custom_call.1} parent=1 // pred_check
      _
    $region27: #{tpu_custom_call.1} parent=1 // pred_check_branch
      %203 = sbr.rel (0) target = $region29
    $region28: #{tpu_custom_call.1} parent=1 // pred_region
      %204 = dma.done [#allocation4], 256
    $region29: #{tpu_custom_call.1} parent=1 // pred_fallthru
      _
    %205 = vsyncpa [#allocation3], 1
    %206 = vsyncpa [#allocation6], 1
    %207 = vsyncpa [#allocation4], 1

</llo_original>
